<compile_context>
chip_gen: v5e
topology: v5e:2x2
jax: 0.10.0
libtpu: 0.0.40
codegen_flags: <defaults>
</compile_context>

<pallas_src>
import math

import jax
import jax.numpy as jnp
from jax.experimental import pallas as pl
from jax.experimental.pallas import tpu as pltpu


def _build_pe(features: int, max_len: int = 12288) -> jnp.ndarray:
    """Sin/cos positional-encoding buffer, shape (max_len, 1, features), f32."""
    position = jnp.arange(max_len, dtype=jnp.float32)[:, None]                  # (max_len, 1)
    div_term = jnp.exp(
        jnp.arange(0, features, 2, dtype=jnp.float32) * (-math.log(10000.0) / features)
    )                                                                           # (ceil(F/2),)
    angles = position * div_term                                                # (max_len, ceil(F/2))
    pe = jnp.zeros((max_len, 1, features), dtype=jnp.float32)
    pe = pe.at[:, 0, 0::2].set(jnp.sin(angles))
    pe = pe.at[:, 0, 1::2].set(jnp.cos(angles[:, : features // 2]))
    return pe


def _add_pe_kernel(x_ref, pe_ref, o_ref):
    # x_ref: (TS, TB, F); pe_ref: (TS, 1, F) -> broadcasts over the batch dim.
    # f32 accumulate + explicit cast on store: safe for bf16 I/O on v5e and for
    # mixed x/pe dtypes.
    x = x_ref[...].astype(jnp.float32)
    pe = pe_ref[...].astype(jnp.float32)
    o_ref[...] = (x + pe).astype(o_ref.dtype)


_DEFAULT_VMEM_CAP = 64 * 1024 * 1024  # conservative fallback (v7x per-TC VMEM)


def _vmem_capacity_bytes() -> int:
    # TODO(synk): confirm get_tpu_info() reports per-TensorCore (not per-chip)
    # VMEM on v7x; the conservative branch below assumes 64 MiB when <= 64 MiB.
    try:
        info = pltpu.get_tpu_info()
        return int(getattr(info, "vmem_capacity_bytes", _DEFAULT_VMEM_CAP))
    except Exception:  # pragma: no cover - trace-time query unavailable
        return _DEFAULT_VMEM_CAP


def _round_up(n: int, m: int) -> int:
    return ((n + m - 1) // m) * m


def positional_encoding_forward(x: jnp.ndarray, pe: jnp.ndarray,
                                *, seq_tile: int | None = None,
                                batch_tile: int | None = None) -> jnp.ndarray:
    """x: (seq, batch, features); pe: (max_len, 1, features)."""
    S, B, F = x.shape
    assert pe.ndim == 3 and pe.shape[1] == 1 and pe.shape[2] == F
    assert pe.shape[0] >= S

    itemsize = jnp.dtype(x.dtype).itemsize
    sub = 32 // itemsize            # sublane packing multiple: f32->8, bf16->16, int8->32
    f_pad = _round_up(F, 128)       # lane padding
    pe_row = 32 * f_pad             # padded pe bytes per seq row (size-1 dim -> full sublane group)

    # Generation-specific VMEM budget for the double-buffered working set and
    # the per-step x-tile target.
    vmem_cap = _vmem_capacity_bytes()
    if vmem_cap <= 64 * 1024 * 1024:
        # v7x-class (64 MiB/TC): ~4 MiB x tiles, working set <= ~24 MiB.
        vmem_budget = 24 * 1024 * 1024
        x_tile_target = 4 * 1024 * 1024
    else:
        # v5e / v6e (128 MiB): ~8 MiB x tiles, working set <= ~48 MiB.
        vmem_budget = 48 * 1024 * 1024
        x_tile_target = 8 * 1024 * 1024

    def padded_row_bytes(tb: int) -> tuple[int, int]:
        x_row = _round_up(tb, sub) * f_pad * itemsize          # one seq row of a (tb, F) tile
        return x_row, 2 * x_row + pe_row                       # x-in + out + pe, per seq row

    # Batch tile: prefer the FULL batch (contiguous HBM blocks, fewest steps).
    if batch_tile is not None:
        TB = max(1, min(batch_tile, B))
        if TB < B:
            TB = min(B, _round_up(TB, sub))      # keep (8,128) block divisibility
    else:
        TB = B
        _, row_full = padded_row_bytes(TB)
        if B > sub and 2 * 8 * row_full > vmem_budget:
            # Full-B block can't even reach TS=8: fall back to sublane-aligned
            # batch tiling, largest TB that still allows TS >= 8 in budget.
            tb_pad_max = max(sub, (vmem_budget // 16 - pe_row) // (2 * f_pad * itemsize))
            TB = min(B, max(sub, (tb_pad_max // sub) * sub))

    x_row, row = padded_row_bytes(TB)

    # Seq tile: large enough to amortize per-step overhead and approach the HBM
    # roofline, small enough that the PADDED, double-buffered (x-in + out + pe)
    # tiles stay within the per-chip VMEM budget.
    if seq_tile is None:
        max_ts = max(1, vmem_budget // (2 * row))
        target_ts = max(8, x_tile_target // max(1, x_row))
        TS = max(1, min(S, max_ts, target_ts))
    else:
        TS = max(1, min(seq_tile, S))

    # Batch axis innermost: pe's index_map ignores it, so the pe tile DMA is
    # skipped (block index unchanged) across consecutive batch steps.
    grid = (pl.cdiv(S, TS), pl.cdiv(B, TB))

    working_set = 2 * TS * row                                   # double-buffered, padded
    vmem_limit = int(min(vmem_cap, working_set + 16 * 1024 * 1024))

    return pl.pallas_call(
        _add_pe_kernel,
        out_shape=jax.ShapeDtypeStruct((S, B, F), x.dtype),
        grid_spec=pl.GridSpec(
            grid=grid,
            in_specs=[
                pl.BlockSpec((TS, TB, F), lambda s, b: (s, b, 0)),   # x
                # Full pe buffer, unsliced: only blocks 0..cdiv(S,TS)-1 are addressed;
                # rows past S (within max_len) align with padded x rows and are harmless.
                pl.BlockSpec((TS, 1, F), lambda s, b: (s, 0, 0)),    # pe (reused over batch)
            ],
            out_specs=pl.BlockSpec((TS, TB, F), lambda s, b: (s, b, 0)),
        ),
        compiler_params=pltpu.CompilerParams(
            # Both axes independent -> megacore (v7x) can split them.
            dimension_semantics=("parallel", "parallel"),
            vmem_limit_bytes=vmem_limit,
        ),
    )(x, pe)


if __name__ == "__main__":
    MAX_LEN = 128  # small max_len for the synthetic tests (module default is 12288)

    key = jax.random.PRNGKey(0)
    k1, k2, k3 = jax.random.split(key, 3)

    # 1) Small shape matching the module's sequence-first layout (single block,
    #    full-batch, block dims equal to full array dims).
    S1, B1, F1 = 8, 2, 32
    x1 = jax.random.normal(k1, (S1, B1, F1), dtype=jnp.float32)
    pe1 = _build_pe(F1, MAX_LEN)
    out1 = jax.block_until_ready(positional_encoding_forward(x1, pe1))
    ref1 = x1 + pe1[:S1]
    assert out1.shape == x1.shape and out1.dtype == x1.dtype
    assert jnp.allclose(out1, ref1, atol=1e-6, rtol=1e-6)

    # 2) Tiled seq grid with full-batch contiguous blocks (grid = (3, 1)).
    S2, B2, F2 = 48, 16, 128
    x2 = jax.random.normal(k2, (S2, B2, F2), dtype=jnp.float32)
    pe2 = _build_pe(F2, MAX_LEN)
    out2 = jax.block_until_ready(positional_encoding_forward(x2, pe2, seq_tile=16))
    ref2 = x2 + pe2[:S2]
    assert jnp.allclose(out2, ref2, atol=1e-6, rtol=1e-6)

    # 3) Explicit batch tiling (grid = (3, 2)): exercises pe-block reuse across
    #    the inner batch axis.
    out3 = jax.block_until_ready(
        positional_encoding_forward(x2, pe2, seq_tile=16, batch_tile=8))
    assert jnp.allclose(out3, ref2, atol=1e-6, rtol=1e-6)

    # 4) bf16 I/O path (halves x/out HBM traffic; add still done in f32 in-kernel).
    x4 = jax.random.normal(k3, (S2, B2, F2), dtype=jnp.bfloat16)
    out4 = jax.block_until_ready(positional_encoding_forward(x4, pe2, seq_tile=16))
    ref4 = (x4.astype(jnp.float32) + pe2[:S2]).astype(jnp.bfloat16)
    assert out4.dtype == jnp.bfloat16
    assert jnp.allclose(out4.astype(jnp.float32), ref4.astype(jnp.float32),
                        atol=1e-2, rtol=1e-2)

    print("KERNEL_OK")
</pallas_src>

<mosaic_0001>
module attributes {stable_mosaic.version = 11 : i64} {
  func.func @_add_pe_kernel(%arg0: i32, %arg1: i32, %arg2: memref<8x2x32xf32, #tpu.memory_space<vmem>>, %arg3: memref<8x1x32xf32, #tpu.memory_space<vmem>>, %arg4: memref<8x2x32xf32, #tpu.memory_space<vmem>>) attributes {dimension_semantics = [#tpu.dimension_semantics<parallel>, #tpu.dimension_semantics<parallel>], iteration_bounds = array<i64: 1, 1>, scalar_prefetch = 0 : i64, scratch_operands = 0 : i64, tpu.core_type = #tpu.core_type<tc>, window_params = [{transform_indices = @transform_0, window_bounds = array<i64: 8, 2, 32>}, {transform_indices = @transform_1, window_bounds = array<i64: 8, 1, 32>}, {transform_indices = @transform_2, window_bounds = array<i64: 8, 2, 32>}]} {
    %c0 = arith.constant 0 : index
    %c0_0 = arith.constant 0 : index
    %c0_1 = arith.constant 0 : index
    %0 = vector.load %arg2[%c0, %c0_0, %c0_1] : memref<8x2x32xf32, #tpu.memory_space<vmem>>, vector<8x2x32xf32>
    %c0_2 = arith.constant 0 : index
    %c0_3 = arith.constant 0 : index
    %c0_4 = arith.constant 0 : index
    %1 = vector.load %arg3[%c0_2, %c0_3, %c0_4] : memref<8x1x32xf32, #tpu.memory_space<vmem>>, vector<8x1x32xf32>
    %2 = vector.broadcast %1 : vector<8x1x32xf32> to vector<8x2x32xf32>
    %3 = arith.addf %0, %2 : vector<8x2x32xf32>
    %c0_5 = arith.constant 0 : index
    %c0_6 = arith.constant 0 : index
    %c0_7 = arith.constant 0 : index
    %4 = vector.load %arg4[%c0_5, %c0_6, %c0_7] : memref<8x2x32xf32, #tpu.memory_space<vmem>>, vector<8x2x32xf32>
    tpu.vector_store %arg4[%c0_5, %c0_6, %c0_7], %3 {strides = array<i32>} : memref<8x2x32xf32, #tpu.memory_space<vmem>>, vector<8x2x32xf32>,
    return
  }
  func.func @transform_0(%arg0: i32, %arg1: i32) -> (i32, i32, i32) {
    %c0_i32 = arith.constant 0 : i32
    %c0_i32_0 = arith.constant 0 : i32
    return %arg0, %arg1, %c0_i32 : i32, i32, i32
  }
  func.func @transform_1(%arg0: i32, %arg1: i32) -> (i32, i32, i32) {
    %c0_i32 = arith.constant 0 : i32
    %c0_i32_0 = arith.constant 0 : i32
    %c0_i32_1 = arith.constant 0 : i32
    return %arg0, %c0_i32, %c0_i32_0 : i32, i32, i32
  }
  func.func @transform_2(%arg0: i32, %arg1: i32) -> (i32, i32, i32) {
    %c0_i32 = arith.constant 0 : i32
    %c0_i32_0 = arith.constant 0 : i32
    return %arg0, %arg1, %c0_i32 : i32, i32, i32
  }
}

</mosaic_0001>

<llo_original>
// kernel: tpu_custom_call.1
$region0: #{tpu_custom_call.1}
  #allocation0 [shape = 'u32[]', space=smem, size = 0x4, offset = 0x4, fixed_abs, tag = 'smem constant byte address 0x4 - core index']
  #allocation1 [shape = 'u32[72,128]{1,0:T(1,128)}', space=vmem, size = 0x9000, scoped, tag = 'internal scratch']
  %s0 = inlined_call_operand.vmem [shape: f32[8,2,32], index: 0, kind: input, shape index: {}]
  %s1 = inlined_call_operand.vmem [shape: f32[128,1,32], index: 1, kind: input, shape index: {}]
  %s2 = inlined_call_operand.hbm [shape: f32[8,2,32], index: 2, kind: output, shape index: {}]
  %s3 = sld [smem:[#allocation0]]
  $region18: #{tpu_custom_call.1} parent=0
    _
  %s5 = ssub.s32 1, %s3
  %s6 = scalar_select 0, %s5, %s3
  $region1: #{tpu_custom_call.1} parent=0
    #allocation2 [shape = 'u8[8192]{0}', space=vmem, size = 0x2000, scoped, tag = 'output window, operand 0, single buffered']
    #allocation3 [shape = 's32[1]{0}', space=sflag, size = 0x4, scoped, tag = 'scoped memory for tpu_custom_call.1']
    %7 = vsyncpa [#allocation3], 0
    // Predicated region
    $region2: #{tpu_custom_call.1} parent=1 // pred_check
      _
    $region3: #{tpu_custom_call.1} parent=1 // pred_check_branch
      %9 = sbr.rel (0) target = $region5
    $region4: #{tpu_custom_call.1} parent=1 // pred_region
      _
    $region5: #{tpu_custom_call.1} parent=1 // pred_fallthru
      _
    // Predicated region
    $region6: #{tpu_custom_call.1} parent=1 // pred_check
      _
    $region7: #{tpu_custom_call.1} parent=1 // pred_check_branch
      %11 = sbr.rel (0) target = $region9
    $region8: #{tpu_custom_call.1} parent=1 // pred_region
      _
    $region9: #{tpu_custom_call.1} parent=1 // pred_fallthru
      _
    %v12 = vld [vmem:[%s0] sm:$0x3]
    %v13 = vld [vmem:[%s0 + $0x2] sm:$0x3]
    %v14 = vld [vmem:[%s0 + $0x4] sm:$0x3]
    %v15 = vld [vmem:[%s0 + $0x6] sm:$0x3]
    %v16 = vld [vmem:[%s0 + $0x8] sm:$0x3]
    %v17 = vld [vmem:[%s0 + $0xa] sm:$0x3]
    %v18 = vld [vmem:[%s0 + $0xc] sm:$0x3]
    %v19 = vld [vmem:[%s0 + $0xe] sm:$0x3]
    %v20 = vld [vmem:[%s1] sm:$0x1]
    %v21 = vld [vmem:[%s1 + $0x1] sm:$0x1]
    %v22 = vld [vmem:[%s1 + $0x2] sm:$0x1]
    %v23 = vld [vmem:[%s1 + $0x3] sm:$0x1]
    %v24 = vld [vmem:[%s1 + $0x4] sm:$0x1]
    %v25 = vld [vmem:[%s1 + $0x5] sm:$0x1]
    %v26 = vld [vmem:[%s1 + $0x6] sm:$0x1]
    %v27 = vld [vmem:[%s1 + $0x7] sm:$0x1]
    %v36 = vperm.slane %v20, 0
    %v37 = vperm.slane %v21, 0
    %v38 = vperm.slane %v22, 0
    %v39 = vperm.slane %v23, 0
    %v40 = vperm.slane %v24, 0
    %v41 = vperm.slane %v25, 0
    %v42 = vperm.slane %v26, 0
    %v43 = vperm.slane %v27, 0
    %v52 = vadd.f32 %v12, %v36
    %v53 = vadd.f32 %v13, %v37
    %v54 = vadd.f32 %v14, %v38
    %v55 = vadd.f32 %v15, %v39
    %v56 = vadd.f32 %v16, %v40
    %v57 = vadd.f32 %v17, %v41
    %v58 = vadd.f32 %v18, %v42
    %v59 = vadd.f32 %v19, %v43
    %vm60 = vcmask 254976
    %61 = vst.msk [vmem:[#allocation2] sm:$0x3] %vm60, %v52
    %62 = vst.msk [vmem:[#allocation2 + $0x2] sm:$0x3] %vm60, %v53
    %63 = vst.msk [vmem:[#allocation2 + $0x4] sm:$0x3] %vm60, %v54
    %64 = vst.msk [vmem:[#allocation2 + $0x6] sm:$0x3] %vm60, %v55
    %65 = vst.msk [vmem:[#allocation2 + $0x8] sm:$0x3] %vm60, %v56
    %66 = vst.msk [vmem:[#allocation2 + $0xa] sm:$0x3] %vm60, %v57
    %67 = vst.msk [vmem:[#allocation2 + $0xc] sm:$0x3] %vm60, %v58
    %68 = vst.msk [vmem:[#allocation2 + $0xe] sm:$0x3] %vm60, %v59
    // Predicated region
    $region10: #{tpu_custom_call.1} parent=1 // pred_check
      _
    $region11: #{tpu_custom_call.1} parent=1 // pred_check_branch
      %70 = sbr.rel (0) target = $region13
    $region12: #{tpu_custom_call.1} parent=1 // pred_region
      %72 = vsyncadd [#allocation3], 0
      %s73 = sshll.u32 [#allocation2], 4
      %s74 = int_to_ptr.vmem [resolvable:$true] %s73
      %s75 = sshll.u32 %s2, 4
      %s76 = int_to_ptr.hbm [resolvable:$true] %s75
      %81 = dma.vmem_to_hbm [thread:$0]  %s74, 256, %s76, [#allocation3], 32, 32, 2
    $region13: #{tpu_custom_call.1} parent=1 // pred_fallthru
      _
    // Predicated region
    $region14: #{tpu_custom_call.1} parent=1 // pred_check
      _
    $region15: #{tpu_custom_call.1} parent=1 // pred_check_branch
      %83 = sbr.rel (0) target = $region17
    $region16: #{tpu_custom_call.1} parent=1 // pred_region
      %85 = dma.done [#allocation3], 256
    $region17: #{tpu_custom_call.1} parent=1 // pred_fallthru
      _
    %86 = vsyncpa [#allocation3], 1

</llo_original>
